<compile_context>
chip_gen: v7x
topology: tpu7x:2x2x1
jax: 0.10.0
libtpu: 0.0.40
codegen_flags: <defaults>
</compile_context>

<pallas_src>
import functools

import jax
import jax.numpy as jnp
import numpy as np
from jax.experimental import pallas as pl
from jax.experimental.pallas import tpu as pltpu


def _round_up(x, m):
    return ((x + m - 1) // m) * m


def _cdiv(a, b):
    return -(-a // b)


def _compiler_params():
    return pltpu.CompilerParams(
        dimension_semantics=("parallel",),        # megacore / 2-TC sharding on v7x
        vmem_limit_bytes=32 * 1024 * 1024,        # raise v5e's 16 MiB default, safe on v7x
    )


# -----------------------------------------------------------------------------
# Kernels
# -----------------------------------------------------------------------------
def _lookup_kernel(dist_ref, table_ref, out_ref, *, window_size, direction, n, g):
    """Embedding gather for g packed positions per output row.

    dist_ref : (TR, g) int32       raw distances, one per packed position.
    table_ref: (P, g*N, g*Dp) bf16 block-diagonal table, pre-split hi/mid/lo.
    out_ref  : (TR, g*Dp)          lane-dense output rows.
    """
    idx = dist_ref[...]                                   # (TR, g) int32
    # map_to_index (same semantics as the PyTorch module).
    idx = jnp.clip(idx, -window_size, window_size)
    if direction:
        idx = idx + window_size                           # -> [0, 2W] = [0, N)
    else:
        idx = jnp.abs(idx)                                # -> [0, W]  = [0, N)

    tr = dist_ref.shape[0]
    k = table_ref.shape[1]                                # g * N
    col = jax.lax.broadcasted_iota(jnp.int32, (tr, k), 1)
    # One-hot along lanes: packed position j owns columns [j*N, (j+1)*N); the mapped
    # index is always in [0, N), so per-position hits land in disjoint column blocks.
    hit = col == idx[:, 0:1]
    for j in range(1, g):
        hit = jnp.logical_or(hit, col == idx[:, j:j + 1] + j * n)
    onehot = jnp.where(hit, jnp.float32(1.0), jnp.float32(0.0)).astype(jnp.bfloat16)

    # Exact-f32 gather: 0/1 bf16 one-hot @ pre-split bf16 table parts, f32 accumulate.
    acc = jnp.dot(onehot, table_ref[0], preferred_element_type=jnp.float32)
    for p in range(1, table_ref.shape[0]):
        acc = acc + jnp.dot(onehot, table_ref[p], preferred_element_type=jnp.float32)
    out_ref[...] = acc.astype(out_ref.dtype)


def _project_kernel(x_ref, table_ref, out_ref, *, n_parts):
    """rank>2 path: soft relative-position weights @ block-diagonal embedding table.

    x_ref    : (TR, g*N) f32       packed soft weights.
    table_ref: (P, g*N, g*Dp) bf16 pre-split table (hi, mid[, lo]).
    out_ref  : (TR, g*Dp)

    Activations split hi/lo bf16 in-kernel; with the precomputed hi/mid table parts
    this is the exact product of both operands rounded to 16 mantissa bits
    (4 MXU passes instead of 6 for Precision.HIGHEST, ~1e-5 relative error).
    """
    x = x_ref[...]
    x_hi = x.astype(jnp.bfloat16)
    x_lo = (x - x_hi.astype(jnp.float32)).astype(jnp.bfloat16)
    acc = jnp.dot(x_hi, table_ref[0], preferred_element_type=jnp.float32)
    acc = acc + jnp.dot(x_lo, table_ref[0], preferred_element_type=jnp.float32)
    for p in range(1, n_parts):
        acc = acc + jnp.dot(x_hi, table_ref[p], preferred_element_type=jnp.float32)
        acc = acc + jnp.dot(x_lo, table_ref[p], preferred_element_type=jnp.float32)
    out_ref[...] = acc.astype(out_ref.dtype)


# -----------------------------------------------------------------------------
# Module
# -----------------------------------------------------------------------------
class RelativePositionEmbeddings:
    """JAX/Pallas port of the PyTorch RelativePositionEmbeddings module (inference)."""

    def __init__(self, max_rel_positions, embedding_dim, dropout=0.0, direction=True,
                 *, key, out_dtype=jnp.float32):
        if max_rel_positions is None:
            raise ValueError("max_rel_positions must be an int (the reference module "
                             "cannot be constructed with None either).")
        self.window_size = int(max_rel_positions)
        self.embedding_dim = int(embedding_dim)
        self.direction = bool(direction)
        # TODO(synk): dropout (p=0.0 at inference) is identity; not implemented in-kernel.
        self.dropout = dropout
        # out_dtype=bf16 halves writeback (and uses a 1-part table); f32 default matches torch.
        self.out_dtype = jnp.dtype(out_dtype)

        n = self.window_size * 2 + 1 if self.direction else self.window_size + 1
        self.num_embeddings = n
        # nn.Embedding default init: N(0, 1); deterministic from the provided key.
        self.weight = jax.random.normal(key, (n, self.embedding_dim), dtype=jnp.float32)

        # ---- lane-dense packing geometry -----------------------------------------
        d = self.embedding_dim
        if d >= 128:
            d_pad = _round_up(d, 128)
            g = 1
        else:
            d_pad = 1 << max(d - 1, 0).bit_length()        # next power of two >= d
            g = max(1, 128 // d_pad)
            # shrink if the packed table would be unreasonably large (huge windows, tiny D)
            while g > 1 and (g * g) * n * d_pad * 6 > (8 << 20):
                g //= 2
            # widen while the packed table stays small -> longer unmasked stores
            while g * 2 * d_pad <= 512 and (2 * g) * (2 * g) * n * d_pad * 6 <= (2 << 20):
                g *= 2
        self.g, self.d_pad = g, d_pad
        self.k, self.gd = g * n, g * d_pad

        # ---- block-diagonal packed table, pre-split into bf16 hi/mid/lo ----------
        w_pad = self.weight if d_pad == d else jnp.pad(self.weight, ((0, 0), (0, d_pad - d)))
        if g == 1:
            packed = w_pad                                   # (N, Dp)
        else:
            eye = jnp.eye(g, dtype=jnp.float32)
            # packed[j*N + i, j2*Dp + c] = (j == j2) * w_pad[i, c]
            packed = (eye[:, None, :, None] * w_pad[None, :, None, :]).reshape(g * n, g * d_pad)
        t_hi = packed.astype(jnp.bfloat16)
        r1 = packed - t_hi.astype(jnp.float32)
        t_mid = r1.astype(jnp.bfloat16)
        t_lo = (r1 - t_mid.astype(jnp.float32)).astype(jnp.bfloat16)
        n_parts = 1 if self.out_dtype == jnp.bfloat16 else 3
        self.table_stack = jnp.stack([t_hi, t_mid, t_lo][:n_parts], axis=0)  # (P, K, gDp)

    # ---- tiling -------------------------------------------------------------------
    def _row_tiling(self, m, *, in_row_bytes, extra_row_bytes):
        out_row_bytes = self.gd * self.out_dtype.itemsize
        per_row = 2 * (in_row_bytes + out_row_bytes) + extra_row_bytes   # double-buffered
        resident = 2 * int(self.table_stack.size) * 2                    # bf16 stack, x2 bufs
        budget = 16 * 1024 * 1024                                        # working-set target
        avail = max(budget - resident, 2 * 1024 * 1024)
        cap = max(8, min(4096, avail // max(per_row, 1)))
        r8 = _round_up(_cdiv(m, self.g), 8)
        if r8 > 8:
            # at least 2 grid steps so "parallel" can shard across v7x's 2 TensorCores
            cap = min(cap, max(8, _round_up(_cdiv(r8, 2), 8)))
        cap = max(8, (cap // 8) * 8)
        steps = _cdiv(r8, cap)
        tr = _round_up(_cdiv(r8, steps), 8)      # balanced tiles -> minimal tail padding
        r_pad = _round_up(r8, tr)
        return tr, r_pad

    def _unpack(self, out, m, lq, lk):
        g, d, d_pad = self.g, self.embedding_dim, self.d_pad
        r_pad = out.shape[0]
        flat = out.reshape(r_pad * g, d_pad)      # contiguous reshape (free)
        if r_pad * g != m or d_pad != d:
            flat = flat[:m, :d]
        return flat.reshape(lq, lk, d)

    # ---- path: inputs.ndim > 2  (soft weights over embeddings) ---------------------
    def _forward_weights(self, inputs):
        lq, lk, n_in = inputs.shape
        if n_in != self.num_embeddings:
            raise ValueError("last dim must equal num_embeddings")
        g, k, gd = self.g, self.k, self.gd
        m = lq * lk
        tr, r_pad = self._row_tiling(m, in_row_bytes=4 * k, extra_row_bytes=4 * k + 4 * gd)
        m_pad = r_pad * g
        x = inputs.reshape(m, n_in).astype(jnp.float32)
        if m_pad != m:
            x = jnp.pad(x, ((0, m_pad - m), (0, 0)))
        x = x.reshape(r_pad, k)                   # contiguous reshape (free)
        kernel = functools.partial(_project_kernel,
                                   n_parts=min(2, self.table_stack.shape[0]))
        out = pl.pallas_call(
            kernel,
            out_shape=jax.ShapeDtypeStruct((r_pad, gd), self.out_dtype),
            grid=(r_pad // tr,),
            in_specs=[pl.BlockSpec((tr, k), lambda i: (i, 0)),
                      pl.BlockSpec(self.table_stack.shape, lambda i: (0, 0, 0))],
            out_specs=pl.BlockSpec((tr, gd), lambda i: (i, 0)),
            compiler_params=_compiler_params(),
        )(x, self.table_stack)
        return self._unpack(out, m, lq, lk)

    # ---- path: inputs.ndim == 2  (precomputed distance matrix) ---------------------
    def _forward_distance(self, distance):
        lq, lk = distance.shape
        g, n, k, gd = self.g, self.num_embeddings, self.k, self.gd
        m = lq * lk
        tr, r_pad = self._row_tiling(m, in_row_bytes=4 * g, extra_row_bytes=8 * (k + gd))
        m_pad = r_pad * g
        dist_flat = distance.reshape(m).astype(jnp.int32)
        if m_pad != m:
            dist_flat = jnp.pad(dist_flat, (0, m_pad - m))
        dist_packed = dist_flat.reshape(r_pad, g)            # (rows, g) — no N-fold repeat
        kernel = functools.partial(_lookup_kernel, window_size=self.window_size,
                                   direction=self.direction, n=n, g=g)
        out = pl.pallas_call(
            kernel,
            out_shape=jax.ShapeDtypeStruct((r_pad, gd), self.out_dtype),
            grid=(r_pad // tr,),
            in_specs=[pl.BlockSpec((tr, g), lambda i: (i, 0)),
                      pl.BlockSpec(self.table_stack.shape, lambda i: (0, 0, 0))],
            out_specs=pl.BlockSpec((tr, gd), lambda i: (i, 0)),
            compiler_params=_compiler_params(),
        )(dist_packed, self.table_stack)
        return self._unpack(out, m, lq, lk)

    # ---- path: inputs.ndim == 1  (positions -> pairwise distances) -----------------
    def _forward_positions(self, positions):
        positions = jnp.atleast_1d(jnp.squeeze(positions)).astype(jnp.int32)
        distance = positions[:, None] - positions[None, :]   # trivial XLA broadcast-sub
        return self._forward_distance(distance)

    def __call__(self, inputs):
        if inputs.ndim > 2:
            return self._forward_weights(inputs)
        if inputs.ndim == 2:
            return self._forward_distance(inputs)
        return self._forward_positions(inputs)


def _reference(module, inputs):
    """Pure numpy reference of the PyTorch forward (dropout p=0 -> identity)."""
    w = np.asarray(module.weight)
    x = np.asarray(inputs)
    if x.ndim > 2:
        return x.astype(np.float32) @ w
    dist = x if x.ndim == 2 else (np.squeeze(x)[:, None] - np.squeeze(x)[None, :])
    dist = np.clip(dist, -module.window_size, module.window_size)
    idx = dist + module.window_size if module.direction else np.abs(dist)
    return w[idx.astype(np.int64)]


if __name__ == "__main__":
    key = jax.random.PRNGKey(0)
    k_w, k_soft, k_dist, k_w2 = jax.random.split(key, 4)

    W, D = 4, 32                         # max_rel_positions, embedding_dim
    mod = RelativePositionEmbeddings(W, D, dropout=0.0, direction=True, key=k_w)

    # Path 1: 1-D positions -> pairwise distances -> lookup (exercises row padding).
    L1 = 12
    positions = jnp.arange(L1, dtype=jnp.int32)
    out1 = jax.block_until_ready(mod(positions))
    np.testing.assert_allclose(np.asarray(out1), _reference(mod, positions),
                               rtol=1e-4, atol=1e-5)
    assert out1.shape == (L1, L1, D)

    # Path 2: 2-D distance matrix -> embedding lookup (values beyond the window get clipped).
    L = 8
    dist = jax.random.randint(k_dist, (L, L), -2 * W, 2 * W + 1, dtype=jnp.int32)
    out2 = jax.block_until_ready(mod(dist))
    np.testing.assert_allclose(np.asarray(out2), _reference(mod, dist),
                               rtol=1e-4, atol=1e-5)
    assert out2.shape == (L, L, D)

    # Path 3: rank-3 soft weights over embeddings -> block-diag matmul with the table.
    # 4-pass 16-bit-operand product (~1e-5 relative error vs the f32 reference).
    soft = jax.random.uniform(k_soft, (L, L, mod.num_embeddings), dtype=jnp.float32)
    out3 = jax.block_until_ready(mod(soft))
    np.testing.assert_allclose(np.asarray(out3), _reference(mod, soft),
                               rtol=5e-4, atol=5e-4)
    assert out3.shape == (L, L, D)

    # direction=False branch (abs(distance) indexing).
    mod_nd = RelativePositionEmbeddings(W, D, dropout=0.0, direction=False, key=k_w)
    out4 = jax.block_until_ready(mod_nd(dist))
    np.testing.assert_allclose(np.asarray(out4), _reference(mod_nd, dist),
                               rtol=1e-4, atol=1e-5)

    # embedding_dim that does not divide 128 (D=24 -> padded to 32 internally).
    mod_24 = RelativePositionEmbeddings(W, 24, dropout=0.0, direction=True, key=k_w2)
    out5 = jax.block_until_ready(mod_24(dist))
    np.testing.assert_allclose(np.asarray(out5), _reference(mod_24, dist),
                               rtol=1e-4, atol=1e-5)
    assert out5.shape == (L, L, 24)

    print("KERNEL_OK")
</pallas_src>

<mosaic_0001>
module attributes {stable_mosaic.version = 11 : i64} {
  func.func @_lookup_kernel(%arg0: i32, %arg1: memref<8x16xi32, #tpu.memory_space<vmem>>, %arg2: memref<3x144x512xbf16, #tpu.memory_space<vmem>>, %arg3: memref<8x512xf32, #tpu.memory_space<vmem>>) attributes {dimension_semantics = [#tpu.dimension_semantics<parallel>], iteration_bounds = array<i64: 2>, scalar_prefetch = 0 : i64, scratch_operands = 0 : i64, tpu.core_type = #tpu.core_type<tc>, window_params = [{transform_indices = @transform_0, window_bounds = array<i64: 8, 16>}, {pipeline_mode = #tpu.pipeline_mode<synchronous>, transform_indices = @transform_1, window_bounds = array<i64: 3, 144, 512>}, {transform_indices = @transform_2, window_bounds = array<i64: 8, 512>}]} {
    %c0 = arith.constant 0 : index
    %c0_0 = arith.constant 0 : index
    %0 = vector.load %arg1[%c0, %c0_0] : memref<8x16xi32, #tpu.memory_space<vmem>>, vector<8x16xi32>
    %c-4_i32 = arith.constant -4 : i32
    %c4_i32 = arith.constant 4 : i32
    %1 = vector.broadcast %c-4_i32 : i32 to vector<8x16xi32>
    %2 = arith.maxsi %1, %0 : vector<8x16xi32>
    %3 = vector.broadcast %c4_i32 : i32 to vector<8x16xi32>
    %4 = arith.minsi %3, %2 : vector<8x16xi32>
    %c4_i32_1 = arith.constant 4 : i32
    %5 = vector.broadcast %c4_i32_1 : i32 to vector<8x16xi32>
    %6 = arith.addi %4, %5 : vector<8x16xi32>
    %7 = tpu.iota {dimensions = array<i32: 1>} : vector<8x144xi32>
    %8 = vector.extract_strided_slice %6 {offsets = [0, 0], sizes = [8, 1], strides = [1, 1]} : vector<8x16xi32> to vector<8x1xi32>
    %9 = vector.broadcast %8 : vector<8x1xi32> to vector<8x144xi32>
    %10 = arith.cmpi eq, %7, %9 : vector<8x144xi32>
    %11 = vector.extract_strided_slice %6 {offsets = [0, 1], sizes = [8, 1], strides = [1, 1]} : vector<8x16xi32> to vector<8x1xi32>
    %c9_i32 = arith.constant 9 : i32
    %12 = vector.broadcast %c9_i32 : i32 to vector<8x1xi32>
    %13 = arith.addi %11, %12 : vector<8x1xi32>
    %14 = vector.broadcast %13 : vector<8x1xi32> to vector<8x144xi32>
    %15 = arith.cmpi eq, %7, %14 : vector<8x144xi32>
    %16 = arith.ori %10, %15 : vector<8x144xi1>
    %17 = vector.extract_strided_slice %6 {offsets = [0, 2], sizes = [8, 1], strides = [1, 1]} : vector<8x16xi32> to vector<8x1xi32>
    %c18_i32 = arith.constant 18 : i32
    %18 = vector.broadcast %c18_i32 : i32 to vector<8x1xi32>
    %19 = arith.addi %17, %18 : vector<8x1xi32>
    %20 = vector.broadcast %19 : vector<8x1xi32> to vector<8x144xi32>
    %21 = arith.cmpi eq, %7, %20 : vector<8x144xi32>
    %22 = arith.ori %16, %21 : vector<8x144xi1>
    %23 = vector.extract_strided_slice %6 {offsets = [0, 3], sizes = [8, 1], strides = [1, 1]} : vector<8x16xi32> to vector<8x1xi32>
    %c27_i32 = arith.constant 27 : i32
    %24 = vector.broadcast %c27_i32 : i32 to vector<8x1xi32>
    %25 = arith.addi %23, %24 : vector<8x1xi32>
    %26 = vector.broadcast %25 : vector<8x1xi32> to vector<8x144xi32>
    %27 = arith.cmpi eq, %7, %26 : vector<8x144xi32>
    %28 = arith.ori %22, %27 : vector<8x144xi1>
    %29 = vector.extract_strided_slice %6 {offsets = [0, 4], sizes = [8, 1], strides = [1, 1]} : vector<8x16xi32> to vector<8x1xi32>
    %c36_i32 = arith.constant 36 : i32
    %30 = vector.broadcast %c36_i32 : i32 to vector<8x1xi32>
    %31 = arith.addi %29, %30 : vector<8x1xi32>
    %32 = vector.broadcast %31 : vector<8x1xi32> to vector<8x144xi32>
    %33 = arith.cmpi eq, %7, %32 : vector<8x144xi32>
    %34 = arith.ori %28, %33 : vector<8x144xi1>
    %35 = vector.extract_strided_slice %6 {offsets = [0, 5], sizes = [8, 1], strides = [1, 1]} : vector<8x16xi32> to vector<8x1xi32>
    %c45_i32 = arith.constant 45 : i32
    %36 = vector.broadcast %c45_i32 : i32 to vector<8x1xi32>
    %37 = arith.addi %35, %36 : vector<8x1xi32>
    %38 = vector.broadcast %37 : vector<8x1xi32> to vector<8x144xi32>
    %39 = arith.cmpi eq, %7, %38 : vector<8x144xi32>
    %40 = arith.ori %34, %39 : vector<8x144xi1>
    %41 = vector.extract_strided_slice %6 {offsets = [0, 6], sizes = [8, 1], strides = [1, 1]} : vector<8x16xi32> to vector<8x1xi32>
    %c54_i32 = arith.constant 54 : i32
    %42 = vector.broadcast %c54_i32 : i32 to vector<8x1xi32>
    %43 = arith.addi %41, %42 : vector<8x1xi32>
    %44 = vector.broadcast %43 : vector<8x1xi32> to vector<8x144xi32>
    %45 = arith.cmpi eq, %7, %44 : vector<8x144xi32>
    %46 = arith.ori %40, %45 : vector<8x144xi1>
    %47 = vector.extract_strided_slice %6 {offsets = [0, 7], sizes = [8, 1], strides = [1, 1]} : vector<8x16xi32> to vector<8x1xi32>
    %c63_i32 = arith.constant 63 : i32
    %48 = vector.broadcast %c63_i32 : i32 to vector<8x1xi32>
    %49 = arith.addi %47, %48 : vector<8x1xi32>
    %50 = vector.broadcast %49 : vector<8x1xi32> to vector<8x144xi32>
    %51 = arith.cmpi eq, %7, %50 : vector<8x144xi32>
    %52 = arith.ori %46, %51 : vector<8x144xi1>
    %53 = vector.extract_strided_slice %6 {offsets = [0, 8], sizes = [8, 1], strides = [1, 1]} : vector<8x16xi32> to vector<8x1xi32>
    %c72_i32 = arith.constant 72 : i32
    %54 = vector.broadcast %c72_i32 : i32 to vector<8x1xi32>
    %55 = arith.addi %53, %54 : vector<8x1xi32>
    %56 = vector.broadcast %55 : vector<8x1xi32> to vector<8x144xi32>
    %57 = arith.cmpi eq, %7, %56 : vector<8x144xi32>
    %58 = arith.ori %52, %57 : vector<8x144xi1>
    %59 = vector.extract_strided_slice %6 {offsets = [0, 9], sizes = [8, 1], strides = [1, 1]} : vector<8x16xi32> to vector<8x1xi32>
    %c81_i32 = arith.constant 81 : i32
    %60 = vector.broadcast %c81_i32 : i32 to vector<8x1xi32>
    %61 = arith.addi %59, %60 : vector<8x1xi32>
    %62 = vector.broadcast %61 : vector<8x1xi32> to vector<8x144xi32>
    %63 = arith.cmpi eq, %7, %62 : vector<8x144xi32>
    %64 = arith.ori %58, %63 : vector<8x144xi1>
    %65 = vector.extract_strided_slice %6 {offsets = [0, 10], sizes = [8, 1], strides = [1, 1]} : vector<8x16xi32> to vector<8x1xi32>
    %c90_i32 = arith.constant 90 : i32
    %66 = vector.broadcast %c90_i32 : i32 to vector<8x1xi32>
    %67 = arith.addi %65, %66 : vector<8x1xi32>
    %68 = vector.broadcast %67 : vector<8x1xi32> to vector<8x144xi32>
    %69 = arith.cmpi eq, %7, %68 : vector<8x144xi32>
    %70 = arith.ori %64, %69 : vector<8x144xi1>
    %71 = vector.extract_strided_slice %6 {offsets = [0, 11], sizes = [8, 1], strides = [1, 1]} : vector<8x16xi32> to vector<8x1xi32>
    %c99_i32 = arith.constant 99 : i32
    %72 = vector.broadcast %c99_i32 : i32 to vector<8x1xi32>
    %73 = arith.addi %71, %72 : vector<8x1xi32>
    %74 = vector.broadcast %73 : vector<8x1xi32> to vector<8x144xi32>
    %75 = arith.cmpi eq, %7, %74 : vector<8x144xi32>
    %76 = arith.ori %70, %75 : vector<8x144xi1>
    %77 = vector.extract_strided_slice %6 {offsets = [0, 12], sizes = [8, 1], strides = [1, 1]} : vector<8x16xi32> to vector<8x1xi32>
    %c108_i32 = arith.constant 108 : i32
    %78 = vector.broadcast %c108_i32 : i32 to vector<8x1xi32>
    %79 = arith.addi %77, %78 : vector<8x1xi32>
    %80 = vector.broadcast %79 : vector<8x1xi32> to vector<8x144xi32>
    %81 = arith.cmpi eq, %7, %80 : vector<8x144xi32>
    %82 = arith.ori %76, %81 : vector<8x144xi1>
    %83 = vector.extract_strided_slice %6 {offsets = [0, 13], sizes = [8, 1], strides = [1, 1]} : vector<8x16xi32> to vector<8x1xi32>
    %c117_i32 = arith.constant 117 : i32
    %84 = vector.broadcast %c117_i32 : i32 to vector<8x1xi32>
    %85 = arith.addi %83, %84 : vector<8x1xi32>
    %86 = vector.broadcast %85 : vector<8x1xi32> to vector<8x144xi32>
    %87 = arith.cmpi eq, %7, %86 : vector<8x144xi32>
    %88 = arith.ori %82, %87 : vector<8x144xi1>
    %89 = vector.extract_strided_slice %6 {offsets = [0, 14], sizes = [8, 1], strides = [1, 1]} : vector<8x16xi32> to vector<8x1xi32>
    %c126_i32 = arith.constant 126 : i32
    %90 = vector.broadcast %c126_i32 : i32 to vector<8x1xi32>
    %91 = arith.addi %89, %90 : vector<8x1xi32>
    %92 = vector.broadcast %91 : vector<8x1xi32> to vector<8x144xi32>
    %93 = arith.cmpi eq, %7, %92 : vector<8x144xi32>
    %94 = arith.ori %88, %93 : vector<8x144xi1>
    %95 = vector.extract_strided_slice %6 {offsets = [0, 15], sizes = [8, 1], strides = [1, 1]} : vector<8x16xi32> to vector<8x1xi32>
    %c135_i32 = arith.constant 135 : i32
    %96 = vector.broadcast %c135_i32 : i32 to vector<8x1xi32>
    %97 = arith.addi %95, %96 : vector<8x1xi32>
    %98 = vector.broadcast %97 : vector<8x1xi32> to vector<8x144xi32>
    %99 = arith.cmpi eq, %7, %98 : vector<8x144xi32>
    %100 = arith.ori %94, %99 : vector<8x144xi1>
    %cst = arith.constant 1.000000e+00 : f32
    %cst_2 = arith.constant 0.000000e+00 : f32
    %101 = vector.broadcast %cst : f32 to vector<8x144xf32>
    %102 = vector.broadcast %cst_2 : f32 to vector<8x144xf32>
    %103 = arith.select %100, %101, %102 : vector<8x144xi1>, vector<8x144xf32>
    %104 = arith.truncf %103 : vector<8x144xf32> to vector<8x144xbf16>
    %c0_3 = arith.constant 0 : index
    %c0_4 = arith.constant 0 : index
    %c0_5 = arith.constant 0 : index
    %105 = vector.load %arg2[%c0_3, %c0_4, %c0_5] : memref<3x144x512xbf16, #tpu.memory_space<vmem>>, vector<1x144x512xbf16>
    %106 = vector.shape_cast %105 : vector<1x144x512xbf16> to vector<144x512xbf16>
    %cst_6 = arith.constant dense<0.000000e+00> : vector<8x512xf32>
    %107 = tpu.matmul %104, %106, %cst_6 {dimension_numbers = #tpu.dot_dimension_numbers<[1], [0], [0], [1], [0, 0, 1, 1], [], []>} : vector<8x144xbf16>, vector<144x512xbf16>, vector<8x512xf32> -> vector<8x512xf32>
    %c1 = arith.constant 1 : index
    %c0_7 = arith.constant 0 : index
    %c0_8 = arith.constant 0 : index
    %108 = vector.load %arg2[%c1, %c0_7, %c0_8] : memref<3x144x512xbf16, #tpu.memory_space<vmem>>, vector<1x144x512xbf16>
    %109 = vector.shape_cast %108 : vector<1x144x512xbf16> to vector<144x512xbf16>
    %cst_9 = arith.constant dense<0.000000e+00> : vector<8x512xf32>
    %110 = tpu.matmul %104, %109, %cst_9 {dimension_numbers = #tpu.dot_dimension_numbers<[1], [0], [0], [1], [0, 0, 1, 1], [], []>} : vector<8x144xbf16>, vector<144x512xbf16>, vector<8x512xf32> -> vector<8x512xf32>
    %111 = arith.addf %107, %110 : vector<8x512xf32>
    %c2 = arith.constant 2 : index
    %c0_10 = arith.constant 0 : index
    %c0_11 = arith.constant 0 : index
    %112 = vector.load %arg2[%c2, %c0_10, %c0_11] : memref<3x144x512xbf16, #tpu.memory_space<vmem>>, vector<1x144x512xbf16>
    %113 = vector.shape_cast %112 : vector<1x144x512xbf16> to vector<144x512xbf16>
    %cst_12 = arith.constant dense<0.000000e+00> : vector<8x512xf32>
    %114 = tpu.matmul %104, %113, %cst_12 {dimension_numbers = #tpu.dot_dimension_numbers<[1], [0], [0], [1], [0, 0, 1, 1], [], []>} : vector<8x144xbf16>, vector<144x512xbf16>, vector<8x512xf32> -> vector<8x512xf32>
    %115 = arith.addf %111, %114 : vector<8x512xf32>
    %c0_13 = arith.constant 0 : index
    %c0_14 = arith.constant 0 : index
    %116 = vector.load %arg3[%c0_13, %c0_14] : memref<8x512xf32, #tpu.memory_space<vmem>>, vector<8x512xf32>
    tpu.vector_store %arg3[%c0_13, %c0_14], %115 {strides = array<i32>} : memref<8x512xf32, #tpu.memory_space<vmem>>, vector<8x512xf32>,
    return
  }
  func.func @transform_0(%arg0: i32) -> (i32, i32) {
    %c0_i32 = arith.constant 0 : i32
    %c0_i32_0 = arith.constant 0 : i32
    return %arg0, %c0_i32 : i32, i32
  }
  func.func @transform_1(%arg0: i32) -> (i32, i32, i32) {
    %c0_i32 = arith.constant 0 : i32
    %c0_i32_0 = arith.constant 0 : i32
    %c0_i32_1 = arith.constant 0 : i32
    %c0_i32_2 = arith.constant 0 : i32
    return %c0_i32, %c0_i32_0, %c0_i32_1 : i32, i32, i32
  }
  func.func @transform_2(%arg0: i32) -> (i32, i32) {
    %c0_i32 = arith.constant 0 : i32
    %c0_i32_0 = arith.constant 0 : i32
    return %arg0, %c0_i32 : i32, i32
  }
}

</mosaic_0001>

<llo_original>
// kernel: tpu_custom_call.1
$region0: #{tpu_custom_call.1}
  #allocation0 [shape = 'u32[]', space=smem, size = 0x4, offset = 0x4, fixed_abs, tag = 'smem constant byte address 0x4 - core index']
  #allocation1 [shape = 'u32[144,128]{1,0:T(1,128)}', space=vmem, size = 0x12000, scoped, tag = 'internal scratch']
  %s0 = inlined_call_operand.hbm [shape: s32[16,16], index: 0, kind: input, shape index: {}]
  %s1 = inlined_call_operand.hbm [shape: bf16[3,144,512], index: 1, kind: input, shape index: {}]
  %s2 = inlined_call_operand.hbm [shape: f32[16,512], index: 2, kind: output, shape index: {}]
  %s3 = sld [smem:[#allocation0]]
  $region49: #{tpu_custom_call.1} parent=0
    _
  %s5 = ssub.s32 1, %s3
  %s6 = scalar_select 0, %s5, %s3
  $region1: #{tpu_custom_call.1} parent=0
    #allocation2 [shape = 'u8[8192]{0}', space=vmem, size = 0x2000, scoped, tag = 'input window, operand 0']
    #allocation3 [shape = 's32[2]{0}', space=sflag, size = 0x8, scoped, tag = 'scoped memory for tpu_custom_call.1']
    #allocation4 [shape = 's32[2]{0}', space=sflag, size = 0x8, scoped, tag = 'scoped memory for tpu_custom_call.1']
    #allocation5 [shape = 'u8[442368]{0}', space=vmem, size = 0x6c000, scoped, tag = 'input window, operand 1, single buffered']
    #allocation6 [shape = 's32[1]{0}', space=sflag, size = 0x4, scoped, tag = 'scoped memory for tpu_custom_call.1']
    #allocation7 [shape = 'u8[32768]{0}', space=vmem, size = 0x8000, scoped, tag = 'output window, operand 0']
    %7 = vsyncpa [#allocation3], 0
    %s8 = scalar_lea.sflag [#allocation3], 1
    %9 = vsyncpa %s8, 0
    %10 = vsyncpa [#allocation6], 0
    %11 = vsyncpa [#allocation4], 0
    %s12 = scalar_lea.sflag [#allocation4], 1
    %13 = vsyncpa %s12, 0
    loop: start=0, step=1, limit=4
    $region2: #{tpu_custom_call.1} parent=1 // loop_pre_header
      _
    $region3: #{tpu_custom_call.1} parent=1 // loop_header
      %s15 = sphi 0, %s19
      %p16 = scmp.ge.s32.totalorder %s15, 4
      %s25 = sphi 0, %s27
      %s28 = sphi 0, %s25
      %s29 = sphi 0, %s28
      %s45 = sphi 0, %s29
      %s49 = sphi 0, %s49
      %s51 = sphi 0, %s49
      %s52 = sphi 0, %s51
      %s66 = sphi 0, %s52
      %s72 = sphi 0, %s74
      %s75 = sphi 0, %s72
      %s76 = sphi 0, %s75
      %s92 = sphi 0, %s76
    $region4: #{tpu_custom_call.1} parent=1 // loop_header_branch
      %18 = sbr.rel (%p16) target = $region8
    $region5: #{tpu_custom_call.1} parent=1 // loop_body
      %s20 = ssub.s32 %s15, 1
      %s21 = ssub.s32 %s15, 2
      %s22 = sadd.s32 %s15, 1
      %s23 = ssub.s32 %s15, %s22
      %p24 = scmp.eq.s32.totalorder %s23, 0
      %s26 = sadd.s32 %s25, 1
      %s27 = scalar_select %p24, %s25, %s26
      %p30 = pneg %p24
      %p31 = scmp.eq.s32.totalorder %s15, 1
      %p32 = por %p30, %p31
      %p33 = scmp.ne.s32.totalorder %s25, %s28
      %p34 = scmp.eq.s32.totalorder %s15, 0
      %p35 = por %p33, %p34
      %p36 = scmp.ne.s32.totalorder %s25, %s28
      %p37 = scmp.eq.s32.totalorder %s20, 1
      %p38 = por %p36, %p37
      %p39 = scmp.ne.s32.totalorder %s28, %s29
      %p40 = scmp.eq.s32.totalorder %s20, 0
      %p41 = por %p39, %p40
      %p42 = scmp.ne.s32.totalorder %s28, %s29
      %p43 = scmp.eq.s32.totalorder %s21, 1
      %p44 = por %p42, %p43
      %p46 = scmp.ne.s32.totalorder %s29, %s45
      %p47 = scmp.eq.s32.totalorder %s21, 0
      %p48 = por %p46, %p47
      %s50 = sadd.s32 %s49, 1
      %p53 = scmp.eq.s32.totalorder %s15, 1
      %p54 = scmp.ne.s32.totalorder %s49, %s51
      %p55 = scmp.eq.s32.totalorder %s15, 0
      %p56 = por %p54, %p55
      %p57 = scmp.ne.s32.totalorder %s49, %s51
      %p58 = scmp.eq.s32.totalorder %s20, 1
      %p59 = por %p57, %p58
      %p60 = scmp.ne.s32.totalorder %s51, %s52
      %p61 = scmp.eq.s32.totalorder %s20, 0
      %p62 = por %p60, %p61
      %p63 = scmp.ne.s32.totalorder %s51, %s52
      %p64 = scmp.eq.s32.totalorder %s21, 1
      %p65 = por %p63, %p64
      %p67 = scmp.ne.s32.totalorder %s52, %s66
      %p68 = scmp.eq.s32.totalorder %s21, 0
      %p69 = por %p67, %p68
      %s70 = ssub.s32 %s15, %s22
      %p71 = scmp.eq.s32.totalorder %s70, 0
      %s73 = sadd.s32 %s72, 1
      %s74 = scalar_select %p71, %s72, %s73
      %p77 = pneg %p71
      %p78 = scmp.eq.s32.totalorder %s15, 1
      %p79 = por %p77, %p78
      %p80 = scmp.ne.s32.totalorder %s72, %s75
      %p81 = scmp.eq.s32.totalorder %s15, 0
      %p82 = por %p80, %p81
      %p83 = scmp.ne.s32.totalorder %s72, %s75
      %p84 = scmp.eq.s32.totalorder %s20, 1
      %p85 = por %p83, %p84
      %p86 = scmp.ne.s32.totalorder %s75, %s76
      %p87 = scmp.eq.s32.totalorder %s20, 0
      %p88 = por %p86, %p87
      %p89 = scmp.ne.s32.totalorder %s75, %s76
      %p90 = scmp.eq.s32.totalorder %s21, 1
      %p91 = por %p89, %p90
      %p93 = scmp.ne.s32.totalorder %s76, %s92
      %p94 = scmp.eq.s32.totalorder %s21, 0
      %p95 = por %p93, %p94
      %p96 = scmp.le.s32.totalorder 1, %s15
      %p97 = scmp.lt.s32.totalorder %s15, 3
      %p98 = pnand %p96, %p97
      %p99 = pneg %p98
      // Predicated region
      $region9: #{tpu_custom_call.1} parent=5 // pred_check
        _
      $region10: #{tpu_custom_call.1} parent=5 // pred_check_branch
        %101 = sbr.rel (%p98) target = $region12
      $region11: #{tpu_custom_call.1} parent=5 // pred_region
        %s102 = ssub.s32 %s15, 1
        // Predicated region
        $region13: #{tpu_custom_call.1} parent=11 // pred_check
          %p103 = pneg %p62
        $region14: #{tpu_custom_call.1} parent=11 // pred_check_branch
          %105 = sbr.rel (%p103) target = $region16
        $region15: #{tpu_custom_call.1} parent=11 // pred_region
          %s107 = ssub.s32 13824, 13824
          %108 = vsyncadd [#allocation6], %s107
          %s109 = sshll.u32 [#allocation5], 4
          %s110 = int_to_ptr.vmem [resolvable:$true] %s109
          %115 = dma.hbm_to_vmem [thread:$0]  %s1, 13824, %s110, [#allocation6], 256, 256, 16
        $region16: #{tpu_custom_call.1} parent=11 // pred_fallthru
          _
      $region12: #{tpu_custom_call.1} parent=5 // pred_fallthru
        _
      %p116 = scmp.lt.s32.totalorder %s15, 2
      // Predicated region
      $region17: #{tpu_custom_call.1} parent=5 // pred_check
        %p117 = pneg %p116
      $region18: #{tpu_custom_call.1} parent=5 // pred_check_branch
        %119 = sbr.rel (%p117) target = $region20
      $region19: #{tpu_custom_call.1} parent=5 // pred_region
        // Predicated region
        $region21: #{tpu_custom_call.1} parent=19 // pred_check
          %p120 = pneg %p35
        $region22: #{tpu_custom_call.1} parent=19 // pred_check_branch
          %122 = sbr.rel (%p120) target = $region24
        $region23: #{tpu_custom_call.1} parent=19 // pred_region
          %s123 = sand.u32 %s25, 1
          %s124 = scalar_lea.sflag [#allocation3], %s123
          %s125 = sand.u32 %s25, 1
          %s126 = smul.addr %s125, 8
          %s127 = scalar_lea.vmem [#allocation2], %s126
          %s129 = ssub.s32 128, 128
          %130 = vsyncadd %s124, %s129
          %s131 = smul.addr %s15, 128
          %s132 = scalar_lea.hbm %s0, %s131
          %s134 = sshll.u32 %s127, 4
          %s135 = int_to_ptr.vmem [resolvable:$true] %s134
          %137 = dma.hbm_to_vmem [thread:$0]  %s132, 128, %s135, %s124
        $region24: #{tpu_custom_call.1} parent=19 // pred_fallthru
          _
      $region20: #{tpu_custom_call.1} parent=5 // pred_fallthru
        _
      %p138 = scmp.le.s32.totalorder 1, %s15
      %p139 = scmp.lt.s32.totalorder %s15, 3
      %p140 = pnand %p138, %p139
      %p141 = pneg %p140
      // Predicated region
      $region25: #{tpu_custom_call.1} parent=5 // pred_check
        _
      $region26: #{tpu_custom_call.1} parent=5 // pred_check_branch
        %143 = sbr.rel (%p140) target = $region28
      $region27: #{tpu_custom_call.1} parent=5 // pred_region
        %s144 = ssub.s32 %s15, 1
        %s145 = sand.u32 %s28, 1
        %s146 = scalar_lea.sflag [#allocation3], %s145
        %s147 = sand.u32 %s28, 1
        %s148 = smul.addr %s147, 8
        %s149 = scalar_lea.vmem [#allocation2], %s148
        // Predicated region
        $region29: #{tpu_custom_call.1} parent=27 // pred_check
          %p150 = pneg %p41
        $region30: #{tpu_custom_call.1} parent=27 // pred_check_branch
          %152 = sbr.rel (%p150) target = $region32
        $region31: #{tpu_custom_call.1} parent=27 // pred_region
          %153 = dma.done %s146, 128
        $region32: #{tpu_custom_call.1} parent=27 // pred_fallthru
          _
        // Predicated region
        $region33: #{tpu_custom_call.1} parent=27 // pred_check
          %p154 = pneg %p62
        $region34: #{tpu_custom_call.1} parent=27 // pred_check_branch
          %156 = sbr.rel (%p154) target = $region36
        $region35: #{tpu_custom_call.1} parent=27 // pred_region
          %157 = dma.done [#allocation6], 13824
        $region36: #{tpu_custom_call.1} parent=27 // pred_fallthru
          _
        %s158 = sand.u32 %s28, 1
        %s159 = scalar_lea.sflag [#allocation3], %s158
        %s160 = sand.u32 %s28, 1
        %s161 = smul.addr %s160, 8
        %s162 = scalar_lea.vmem [#allocation2], %s161
        %p163 = pneg %p41
        %p164 = pneg %p38
        %p165 = pneg %p62
        %p166 = pneg %p59
        %p167 = pneg %p88
        %p168 = pneg %p85
        %s169 = sand.u32 %s75, 1
        %s170 = scalar_lea.sflag [#allocation4], %s169
        %s171 = sand.u32 %s75, 1
        %s172 = smul.addr %s171, 32
        %s173 = scalar_lea.vmem [#allocation7], %s172
        %v175 = vld [vmem:[%s149] sm:$0xff]
        %vm176 = vcmp.gt.s32.totalorder %v175, 4294967292
        %v177 = vsel %vm176, %v175, 4294967292
        %vm178 = vcmp.lt.s32.totalorder %v177, 4
        %v179 = vsel %vm178, %v177, 4
        %v180 = vadd.s32 %v179, 4
        %v181 = vlaneseq
        %v182 = vand.u32 %v181, 127
        %v183 = vadd.s32 %v182, 128
        %184 = vset.pattern.permute.xlu0 0
        %185 = vperm.xlu0 %184, %v180
        %v186 = vpop.permute.xlu0 %185
        %vm187 = vcmp.eq.s32.totalorder %v182, %v186
        %vm188 = vcmp.eq.s32.totalorder %v183, %v186
        %v189 = vadd.s32 %v180, 9
        %190 = vset.pattern.permute.xlu0 1
        %191 = vperm.xlu0 %190, %v189
        %v192 = vpop.permute.xlu0 %191
        %vm193 = vcmp.eq.s32.totalorder %v182, %v192
        %vm194 = vcmp.eq.s32.totalorder %v183, %v192
        %vm195 = vmor %vm187, %vm193
        %vm196 = vmor %vm188, %vm194
        %v197 = vadd.s32 %v180, 18
        %198 = vset.pattern.permute.xlu0 2
        %199 = vperm.xlu0 %198, %v197
        %v200 = vpop.permute.xlu0 %199
        %vm201 = vcmp.eq.s32.totalorder %v182, %v200
        %vm202 = vcmp.eq.s32.totalorder %v183, %v200
        %vm203 = vmor %vm195, %vm201
        %vm204 = vmor %vm196, %vm202
        %v205 = vadd.s32 %v180, 27
        %206 = vset.pattern.permute.xlu0 3
        %207 = vperm.xlu0 %206, %v205
        %v208 = vpop.permute.xlu0 %207
        %vm209 = vcmp.eq.s32.totalorder %v182, %v208
        %vm210 = vcmp.eq.s32.totalorder %v183, %v208
        %vm211 = vmor %vm203, %vm209
        %vm212 = vmor %vm204, %vm210
        %v213 = vadd.s32 %v180, 36
        %214 = vset.pattern.permute.xlu0 4
        %215 = vperm.xlu0 %214, %v213
        %v216 = vpop.permute.xlu0 %215
        %vm217 = vcmp.eq.s32.totalorder %v182, %v216
        %vm218 = vcmp.eq.s32.totalorder %v183, %v216
        %vm219 = vmor %vm211, %vm217
        %vm220 = vmor %vm212, %vm218
        %v221 = vadd.s32 %v180, 45
        %222 = vset.pattern.permute.xlu0 5
        %223 = vperm.xlu0 %222, %v221
        %v224 = vpop.permute.xlu0 %223
        %vm225 = vcmp.eq.s32.totalorder %v182, %v224
        %vm226 = vcmp.eq.s32.totalorder %v183, %v224
        %vm227 = vmor %vm219, %vm225
        %vm228 = vmor %vm220, %vm226
        %v229 = vadd.s32 %v180, 54
        %230 = vset.pattern.permute.xlu0 6
        %231 = vperm.xlu0 %230, %v229
        %v232 = vpop.permute.xlu0 %231
        %vm233 = vcmp.eq.s32.totalorder %v182, %v232
        %vm234 = vcmp.eq.s32.totalorder %v183, %v232
        %vm235 = vmor %vm227, %vm233
        %vm236 = vmor %vm228, %vm234
        %v237 = vadd.s32 %v180, 63
        %238 = vset.pattern.permute.xlu0 7
        %239 = vperm.xlu0 %238, %v237
        %v240 = vpop.permute.xlu0 %239
        %vm241 = vcmp.eq.s32.totalorder %v182, %v240
        %vm242 = vcmp.eq.s32.totalorder %v183, %v240
        %vm243 = vmor %vm235, %vm241
        %vm244 = vmor %vm236, %vm242
        %v245 = vadd.s32 %v180, 72
        %246 = vset.pattern.permute.xlu0 8
        %247 = vperm.xlu0 %246, %v245
        %v248 = vpop.permute.xlu0 %247
        %vm249 = vcmp.eq.s32.totalorder %v182, %v248
        %vm250 = vcmp.eq.s32.totalorder %v183, %v248
        %vm251 = vmor %vm243, %vm249
        %vm252 = vmor %vm244, %vm250
        %v253 = vadd.s32 %v180, 81
        %254 = vset.pattern.permute.xlu0 9
        %255 = vperm.xlu0 %254, %v253
        %v256 = vpop.permute.xlu0 %255
        %vm257 = vcmp.eq.s32.totalorder %v182, %v256
        %vm258 = vcmp.eq.s32.totalorder %v183, %v256
        %vm259 = vmor %vm251, %vm257
        %vm260 = vmor %vm252, %vm258
        %v261 = vadd.s32 %v180, 90
        %262 = vset.pattern.permute.xlu0 10
        %263 = vperm.xlu0 %262, %v261
        %v264 = vpop.permute.xlu0 %263
        %vm265 = vcmp.eq.s32.totalorder %v182, %v264
        %vm266 = vcmp.eq.s32.totalorder %v183, %v264
        %vm267 = vmor %vm259, %vm265
        %vm268 = vmor %vm260, %vm266
        %v269 = vadd.s32 %v180, 99
        %270 = vset.pattern.permute.xlu0 11
        %271 = vperm.xlu0 %270, %v269
        %v272 = vpop.permute.xlu0 %271
        %vm273 = vcmp.eq.s32.totalorder %v182, %v272
        %vm274 = vcmp.eq.s32.totalorder %v183, %v272
        %vm275 = vmor %vm267, %vm273
        %vm276 = vmor %vm268, %vm274
        %v277 = vadd.s32 %v180, 108
        %278 = vset.pattern.permute.xlu0 12
        %279 = vperm.xlu0 %278, %v277
        %v280 = vpop.permute.xlu0 %279
        %vm281 = vcmp.eq.s32.totalorder %v182, %v280
        %vm282 = vcmp.eq.s32.totalorder %v183, %v280
        %vm283 = vmor %vm275, %vm281
        %vm284 = vmor %vm276, %vm282
        %v285 = vadd.s32 %v180, 117
        %286 = vset.pattern.permute.xlu0 13
        %287 = vperm.xlu0 %286, %v285
        %v288 = vpop.permute.xlu0 %287
        %vm289 = vcmp.eq.s32.totalorder %v182, %v288
        %vm290 = vcmp.eq.s32.totalorder %v183, %v288
        %vm291 = vmor %vm283, %vm289
        %vm292 = vmor %vm284, %vm290
        %v293 = vadd.s32 %v180, 126
        %294 = vset.pattern.permute.xlu0 14
        %295 = vperm.xlu0 %294, %v293
        %v296 = vpop.permute.xlu0 %295
        %vm297 = vcmp.eq.s32.totalorder %v182, %v296
        %vm298 = vcmp.eq.s32.totalorder %v183, %v296
        %vm299 = vmor %vm291, %vm297
        %vm300 = vmor %vm292, %vm298
        %v301 = vadd.s32 %v180, 135
        %302 = vset.pattern.permute.xlu0 15
        %303 = vperm.xlu0 %302, %v301
        %v304 = vpop.permute.xlu0 %303
        %vm305 = vcmp.eq.s32.totalorder %v182, %v304
        %vm306 = vcmp.eq.s32.totalorder %v183, %v304
        %vm307 = vmor %vm299, %vm305
        %vm308 = vmor %vm300, %vm306
        %v309 = vsel %vm307, 1.0, 0.0
        %v310 = vsel %vm308, 1.0, 0.0
        %v311 = vpack.c.bf16 %v309, %v309
        %v312 = vpack.c.bf16 %v310, %v310
        %v313 = vld [vmem:[#allocation5] sm:$0xff]
        %v314 = vld [vmem:[#allocation5 + $0x8] sm:$0xff]
        %v315 = vld [vmem:[#allocation5 + $0x10] sm:$0xff]
        %v316 = vld [vmem:[#allocation5 + $0x18] sm:$0xff]
        %v317 = vld [vmem:[#allocation5 + $0x20] sm:$0xff]
        %v318 = vld [vmem:[#allocation5 + $0x28] sm:$0xff]
        %v319 = vld [vmem:[#allocation5 + $0x30] sm:$0xff]
        %v320 = vld [vmem:[#allocation5 + $0x38] sm:$0xff]
        %v321 = vld [vmem:[#allocation5 + $0x40] sm:$0xff]
        %v322 = vld [vmem:[#allocation5 + $0x48] sm:$0xff]
        %v323 = vld [vmem:[#allocation5 + $0x50] sm:$0xff]
        %v324 = vld [vmem:[#allocation5 + $0x58] sm:$0xff]
        %v325 = vld [vmem:[#allocation5 + $0x60] sm:$0xff]
        %v326 = vld [vmem:[#allocation5 + $0x68] sm:$0xff]
        %v327 = vld [vmem:[#allocation5 + $0x70] sm:$0xff]
        %v328 = vld [vmem:[#allocation5 + $0x78] sm:$0xff]
        %v329 = vld [vmem:[#allocation5 + $0x80] sm:$0xff]
        %v330 = vld [vmem:[#allocation5 + $0x88] sm:$0xff]
        %v331 = vld [vmem:[#allocation5 + $0x90] sm:$0xff]
        %v332 = vld [vmem:[#allocation5 + $0x98] sm:$0xff]
        %v333 = vld [vmem:[#allocation5 + $0xa0] sm:$0xff]
        %v334 = vld [vmem:[#allocation5 + $0xa8] sm:$0xff]
        %v335 = vld [vmem:[#allocation5 + $0xb0] sm:$0xff]
        %v336 = vld [vmem:[#allocation5 + $0xb8] sm:$0xff]
        %v337 = vld [vmem:[#allocation5 + $0xc0] sm:$0xff]
        %v338 = vld [vmem:[#allocation5 + $0xc8] sm:$0xff]
        %v339 = vld [vmem:[#allocation5 + $0xd0] sm:$0xff]
        %v340 = vld [vmem:[#allocation5 + $0xd8] sm:$0xff]
        %v341 = vld [vmem:[#allocation5 + $0xe0] sm:$0xff]
        %v342 = vld [vmem:[#allocation5 + $0xe8] sm:$0xff]
        %v343 = vld [vmem:[#allocation5 + $0xf0] sm:$0xff]
        %v344 = vld [vmem:[#allocation5 + $0xf8] sm:$0xff]
        %v345 = vld [vmem:[#allocation5 + $0x100] sm:$0xff]
        %v346 = vld [vmem:[#allocation5 + $0x108] sm:$0xff]
        %v347 = vld [vmem:[#allocation5 + $0x110] sm:$0xff]
        %v348 = vld [vmem:[#allocation5 + $0x118] sm:$0xff]
        %s349 = scalar_lea.vmem [#allocation5], 288
        %v350 = vld [vmem:[%s349] sm:$0xff]
        %v351 = vld [vmem:[%s349 + $0x8] sm:$0xff]
        %v352 = vld [vmem:[%s349 + $0x10] sm:$0xff]
        %v353 = vld [vmem:[%s349 + $0x18] sm:$0xff]
        %v354 = vld [vmem:[%s349 + $0x20] sm:$0xff]
        %v355 = vld [vmem:[%s349 + $0x28] sm:$0xff]
        %v356 = vld [vmem:[%s349 + $0x30] sm:$0xff]
        %v357 = vld [vmem:[%s349 + $0x38] sm:$0xff]
        %v358 = vld [vmem:[%s349 + $0x40] sm:$0xff]
        %v359 = vld [vmem:[%s349 + $0x48] sm:$0xff]
        %v360 = vld [vmem:[%s349 + $0x50] sm:$0xff]
        %v361 = vld [vmem:[%s349 + $0x58] sm:$0xff]
        %v362 = vld [vmem:[%s349 + $0x60] sm:$0xff]
        %v363 = vld [vmem:[%s349 + $0x68] sm:$0xff]
        %v364 = vld [vmem:[%s349 + $0x70] sm:$0xff]
        %v365 = vld [vmem:[%s349 + $0x78] sm:$0xff]
        %v366 = vld [vmem:[%s349 + $0x80] sm:$0xff]
        %v367 = vld [vmem:[%s349 + $0x88] sm:$0xff]
        %v368 = vld [vmem:[%s349 + $0x90] sm:$0xff]
        %v369 = vld [vmem:[%s349 + $0x98] sm:$0xff]
        %v370 = vld [vmem:[%s349 + $0xa0] sm:$0xff]
        %v371 = vld [vmem:[%s349 + $0xa8] sm:$0xff]
        %v372 = vld [vmem:[%s349 + $0xb0] sm:$0xff]
        %v373 = vld [vmem:[%s349 + $0xb8] sm:$0xff]
        %v374 = vld [vmem:[%s349 + $0xc0] sm:$0xff]
        %v375 = vld [vmem:[%s349 + $0xc8] sm:$0xff]
        %v376 = vld [vmem:[%s349 + $0xd0] sm:$0xff]
        %v377 = vld [vmem:[%s349 + $0xd8] sm:$0xff]
        %v378 = vld [vmem:[%s349 + $0xe0] sm:$0xff]
        %v379 = vld [vmem:[%s349 + $0xe8] sm:$0xff]
        %v380 = vld [vmem:[%s349 + $0xf0] sm:$0xff]
        %v381 = vld [vmem:[%s349 + $0xf8] sm:$0xff]
        %v382 = vld [vmem:[%s349 + $0x100] sm:$0xff]
        %v383 = vld [vmem:[%s349 + $0x108] sm:$0xff]
        %v384 = vld [vmem:[%s349 + $0x110] sm:$0xff]
        %v385 = vld [vmem:[%s349 + $0x118] sm:$0xff]
        %v422 = vunpack.c.l.b16 %v350
        %v423 = vunpack.c.h.b16 %v350
        %v424 = vunpack.c.l.b16 %v351
        %v425 = vunpack.c.h.b16 %v351
        %v426 = vunpack.c.l.b16 %v352
        %v427 = vunpack.c.h.b16 %v352
        %v428 = vunpack.c.l.b16 %v353
        %v429 = vunpack.c.h.b16 %v353
        %v430 = vunpack.c.l.b16 %v354
        %v431 = vunpack.c.h.b16 %v354
        %v432 = vunpack.c.l.b16 %v355
        %v433 = vunpack.c.h.b16 %v355
        %v434 = vunpack.c.l.b16 %v356
        %v435 = vunpack.c.h.b16 %v356
        %v436 = vunpack.c.l.b16 %v357
        %v437 = vunpack.c.h.b16 %v357
        %v438 = vunpack.c.l.b16 %v358
        %v439 = vunpack.c.h.b16 %v358
        %v440 = vunpack.c.l.b16 %v359
        %v441 = vunpack.c.h.b16 %v359
        %v442 = vunpack.c.l.b16 %v360
        %v443 = vunpack.c.h.b16 %v360
        %v444 = vunpack.c.l.b16 %v361
        %v445 = vunpack.c.h.b16 %v361
        %v446 = vunpack.c.l.b16 %v362
        %v447 = vunpack.c.h.b16 %v362
        %v448 = vunpack.c.l.b16 %v363
        %v449 = vunpack.c.h.b16 %v363
        %v450 = vunpack.c.l.b16 %v364
        %v451 = vunpack.c.h.b16 %v364
        %v452 = vunpack.c.l.b16 %v365
        %v453 = vunpack.c.h.b16 %v365
        %v454 = vunpack.c.l.b16 %v366
        %v455 = vunpack.c.h.b16 %v366
        %v456 = vunpack.c.l.b16 %v367
        %v457 = vunpack.c.h.b16 %v367
        %v458 = vunpack.c.l.b16 %v368
        %v459 = vunpack.c.h.b16 %v368
        %v460 = vunpack.c.l.b16 %v369
        %v461 = vunpack.c.h.b16 %v369
        %v462 = vunpack.c.l.b16 %v370
        %v463 = vunpack.c.h.b16 %v370
        %v464 = vunpack.c.l.b16 %v371
        %v465 = vunpack.c.h.b16 %v371
        %v466 = vunpack.c.l.b16 %v372
        %v467 = vunpack.c.h.b16 %v372
        %v468 = vunpack.c.l.b16 %v373
        %v469 = vunpack.c.h.b16 %v373
        %v470 = vunpack.c.l.b16 %v374
        %v471 = vunpack.c.h.b16 %v374
        %v472 = vunpack.c.l.b16 %v375
        %v473 = vunpack.c.h.b16 %v375
        %v474 = vunpack.c.l.b16 %v376
        %v475 = vunpack.c.h.b16 %v376
        %v476 = vunpack.c.l.b16 %v377
        %v477 = vunpack.c.h.b16 %v377
        %v478 = vunpack.c.l.b16 %v378
        %v479 = vunpack.c.h.b16 %v378
        %v480 = vunpack.c.l.b16 %v379
        %v481 = vunpack.c.h.b16 %v379
        %v482 = vunpack.c.l.b16 %v380
        %v483 = vunpack.c.h.b16 %v380
        %v484 = vunpack.c.l.b16 %v381
        %v485 = vunpack.c.h.b16 %v381
        %v486 = vunpack.c.l.b16 %v382
        %v487 = vunpack.c.h.b16 %v382
        %v488 = vunpack.c.l.b16 %v383
        %v489 = vunpack.c.h.b16 %v383
        %v490 = vunpack.c.l.b16 %v384
        %v491 = vunpack.c.h.b16 %v384
        %v492 = vunpack.c.l.b16 %v385
        %v493 = vunpack.c.h.b16 %v385
        %v494 = vpack.c.b16 %v426, %v422
        %v495 = vpack.c.b16 %v427, %v423
        %v496 = vpack.c.b16 %v428, %v424
        %v497 = vpack.c.b16 %v429, %v425
        %v498 = vpack.c.b16 %v434, %v430
        %v499 = vpack.c.b16 %v435, %v431
        %v500 = vpack.c.b16 %v436, %v432
        %v501 = vpack.c.b16 %v437, %v433
        %v502 = vpack.c.b16 %v442, %v438
        %v503 = vpack.c.b16 %v443, %v439
        %v504 = vpack.c.b16 %v444, %v440
        %v505 = vpack.c.b16 %v445, %v441
        %v506 = vpack.c.b16 %v450, %v446
        %v507 = vpack.c.b16 %v451, %v447
        %v508 = vpack.c.b16 %v452, %v448
        %v509 = vpack.c.b16 %v453, %v449
        %v510 = vpack.c.b16 %v458, %v454
        %v511 = vpack.c.b16 %v459, %v455
        %v512 = vpack.c.b16 %v460, %v456
        %v513 = vpack.c.b16 %v461, %v457
        %v514 = vpack.c.b16 %v466, %v462
        %v515 = vpack.c.b16 %v467, %v463
        %v516 = vpack.c.b16 %v468, %v464
        %v517 = vpack.c.b16 %v469, %v465
        %v518 = vpack.c.b16 %v474, %v470
        %v519 = vpack.c.b16 %v475, %v471
        %v520 = vpack.c.b16 %v476, %v472
        %v521 = vpack.c.b16 %v477, %v473
        %v522 = vpack.c.b16 %v482, %v478
        %v523 = vpack.c.b16 %v483, %v479
        %v524 = vpack.c.b16 %v484, %v480
        %v525 = vpack.c.b16 %v485, %v481
        %v526 = vpack.c.b16 %v490, %v486
        %v527 = vpack.c.b16 %v491, %v487
        %v528 = vpack.c.b16 %v492, %v488
        %v529 = vpack.c.b16 %v493, %v489
        %vm566 = vcmask 130048
        %v568 = vsel %vm566, %v312, 0
        %570 = vmatprep.subr.bf16.mxu0 %v495
        %571 = vmatpush1.bf16.msra.mxu0 %v494
        %572 = vmatprep.subr.bf16.mxu0 %v499
        %573 = vmatpush1.bf16.msra.mxu0 %v498
        %574 = vmatprep.subr.bf16.mxu0 %v503
        %575 = vmatpush1.bf16.msra.mxu0 %v502
        %576 = vmatprep.subr.bf16.mxu0 %v507
        %577 = vmatpush1.bf16.msra.mxu0 %v506
        %578 = vmatprep.subr.bf16.mxu0 %v511
        %579 = vmatpush1.bf16.msra.mxu0 %v510
        %580 = vmatprep.subr.bf16.mxu0 %v515
        %581 = vmatpush1.bf16.msra.mxu0 %v514
        %582 = vmatprep.subr.bf16.mxu0 %v519
        %583 = vmatpush1.bf16.msra.mxu0 %v518
        %584 = vmatprep.subr.bf16.mxu0 %v523
        %585 = vmatpush1.bf16.msra.mxu0 %v522
        %586 = vmatprep.subr.bf16.mxu0 %v527
        %587 = vmatpush1.bf16.msra.mxu0 %v526
        %588 = vmatprep.subr.bf16.mxu0 0
        %589 = vmatpush1.bf16.msra.mxu0 0
        %590 = vmatprep.subr.bf16.mxu0 0
        %591 = vmatpush1.bf16.msra.mxu0 0
        %592 = vmatprep.subr.bf16.mxu0 0
        %593 = vmatpush1.bf16.msra.mxu0 0
        %594 = vmatprep.subr.bf16.mxu0 0
        %595 = vmatpush1.bf16.msra.mxu0 0
        %596 = vmatprep.subr.bf16.mxu0 0
        %597 = vmatpush1.bf16.msra.mxu0 0
        %598 = vmatprep.subr.bf16.mxu0 0
        %599 = vmatpush1.bf16.msra.mxu0 0
        %600 = vmatprep.subr.bf16.mxu0 0
        %601 = vmatpush1.bf16.msra.mxu0 0
        %602 = vmatprep.mubr.bf16.mxu0 %v568
        %603 = vmatmul.mubr.bf16.gmra.mrb[0].mxu0 %v311
        %v604 = vpop.f32.mrb[0].mxu0
        %v605 = vadd.f32 0.0, %v604
        %v606 = vpop.f32.mrb[0].mxu0
        %v607 = vadd.f32 0.0, %v606
        %v608 = vpop.f32.mrb[0].mxu0
        %v609 = vpop.f32.mrb[0].mxu0
        %610 = vdwg.mxu0
        %611 = vmatprep.subr.bf16.mxu0 %v497
        %612 = vmatpush1.bf16.msra.mxu0 %v496
        %613 = vmatprep.subr.bf16.mxu0 %v501
        %614 = vmatpush1.bf16.msra.mxu0 %v500
        %615 = vmatprep.subr.bf16.mxu0 %v505
        %616 = vmatpush1.bf16.msra.mxu0 %v504
        %617 = vmatprep.subr.bf16.mxu0 %v509
        %618 = vmatpush1.bf16.msra.mxu0 %v508
        %619 = vmatprep.subr.bf16.mxu0 %v513
        %620 = vmatpush1.bf16.msra.mxu0 %v512
        %621 = vmatprep.subr.bf16.mxu0 %v517
        %622 = vmatpush1.bf16.msra.mxu0 %v516
        %623 = vmatprep.subr.bf16.mxu0 %v521
        %624 = vmatpush1.bf16.msra.mxu0 %v520
        %625 = vmatprep.subr.bf16.mxu0 %v525
        %626 = vmatpush1.bf16.msra.mxu0 %v524
        %627 = vmatprep.subr.bf16.mxu0 %v529
        %628 = vmatpush1.bf16.msra.mxu0 %v528
        %629 = vmatprep.subr.bf16.mxu0 0
        %630 = vmatpush1.bf16.msra.mxu0 0
        %631 = vmatprep.subr.bf16.mxu0 0
        %632 = vmatpush1.bf16.msra.mxu0 0
        %633 = vmatprep.subr.bf16.mxu0 0
        %634 = vmatpush1.bf16.msra.mxu0 0
        %635 = vmatprep.subr.bf16.mxu0 0
        %636 = vmatpush1.bf16.msra.mxu0 0
        %637 = vmatprep.subr.bf16.mxu0 0
        %638 = vmatpush1.bf16.msra.mxu0 0
        %639 = vmatprep.subr.bf16.mxu0 0
        %640 = vmatpush1.bf16.msra.mxu0 0
        %641 = vmatprep.subr.bf16.mxu0 0
        %642 = vmatpush1.bf16.msra.mxu0 0
        %643 = vmatprep.mubr.bf16.mxu0 %v568
        %644 = vmatmul.mubr.bf16.gmra.mrb[0].mxu0 %v311
        %v645 = vpop.f32.mrb[0].mxu0
        %v646 = vadd.f32 0.0, %v645
        %v647 = vpop.f32.mrb[0].mxu0
        %v648 = vadd.f32 0.0, %v647
        %v649 = vpop.f32.mrb[0].mxu0
        %v650 = vpop.f32.mrb[0].mxu0
        %651 = vdwg.mxu0
        %v688 = vunpack.c.l.b16 %v313
        %v689 = vunpack.c.h.b16 %v313
        %v690 = vunpack.c.l.b16 %v314
        %v691 = vunpack.c.h.b16 %v314
        %v692 = vunpack.c.l.b16 %v315
        %v693 = vunpack.c.h.b16 %v315
        %v694 = vunpack.c.l.b16 %v316
        %v695 = vunpack.c.h.b16 %v316
        %v696 = vunpack.c.l.b16 %v317
        %v697 = vunpack.c.h.b16 %v317
        %v698 = vunpack.c.l.b16 %v318
        %v699 = vunpack.c.h.b16 %v318
        %v700 = vunpack.c.l.b16 %v319
        %v701 = vunpack.c.h.b16 %v319
        %v702 = vunpack.c.l.b16 %v320
        %v703 = vunpack.c.h.b16 %v320
        %v704 = vunpack.c.l.b16 %v321
        %v705 = vunpack.c.h.b16 %v321
        %v706 = vunpack.c.l.b16 %v322
        %v707 = vunpack.c.h.b16 %v322
        %v708 = vunpack.c.l.b16 %v323
        %v709 = vunpack.c.h.b16 %v323
        %v710 = vunpack.c.l.b16 %v324
        %v711 = vunpack.c.h.b16 %v324
        %v712 = vunpack.c.l.b16 %v325
        %v713 = vunpack.c.h.b16 %v325
        %v714 = vunpack.c.l.b16 %v326
        %v715 = vunpack.c.h.b16 %v326
        %v716 = vunpack.c.l.b16 %v327
        %v717 = vunpack.c.h.b16 %v327
        %v718 = vunpack.c.l.b16 %v328
        %v719 = vunpack.c.h.b16 %v328
        %v720 = vunpack.c.l.b16 %v329
        %v721 = vunpack.c.h.b16 %v329
        %v722 = vunpack.c.l.b16 %v330
        %v723 = vunpack.c.h.b16 %v330
        %v724 = vunpack.c.l.b16 %v331
        %v725 = vunpack.c.h.b16 %v331
        %v726 = vunpack.c.l.b16 %v332
        %v727 = vunpack.c.h.b16 %v332
        %v728 = vunpack.c.l.b16 %v333
        %v729 = vunpack.c.h.b16 %v333
        %v730 = vunpack.c.l.b16 %v334
        %v731 = vunpack.c.h.b16 %v334
        %v732 = vunpack.c.l.b16 %v335
        %v733 = vunpack.c.h.b16 %v335
        %v734 = vunpack.c.l.b16 %v336
        %v735 = vunpack.c.h.b16 %v336
        %v736 = vunpack.c.l.b16 %v337
        %v737 = vunpack.c.h.b16 %v337
        %v738 = vunpack.c.l.b16 %v338
        %v739 = vunpack.c.h.b16 %v338
        %v740 = vunpack.c.l.b16 %v339
        %v741 = vunpack.c.h.b16 %v339
        %v742 = vunpack.c.l.b16 %v340
        %v743 = vunpack.c.h.b16 %v340
        %v744 = vunpack.c.l.b16 %v341
        %v745 = vunpack.c.h.b16 %v341
        %v746 = vunpack.c.l.b16 %v342
        %v747 = vunpack.c.h.b16 %v342
        %v748 = vunpack.c.l.b16 %v343
        %v749 = vunpack.c.h.b16 %v343
        %v750 = vunpack.c.l.b16 %v344
        %v751 = vunpack.c.h.b16 %v344
        %v752 = vunpack.c.l.b16 %v345
        %v753 = vunpack.c.h.b16 %v345
        %v754 = vunpack.c.l.b16 %v346
        %v755 = vunpack.c.h.b16 %v346
        %v756 = vunpack.c.l.b16 %v347
        %v757 = vunpack.c.h.b16 %v347
        %v758 = vunpack.c.l.b16 %v348
        %v759 = vunpack.c.h.b16 %v348
        %v760 = vpack.c.b16 %v692, %v688
        %v761 = vpack.c.b16 %v693, %v689
        %v762 = vpack.c.b16 %v694, %v690
        %v763 = vpack.c.b16 %v695, %v691
        %v764 = vpack.c.b16 %v700, %v696
        %v765 = vpack.c.b16 %v701, %v697
        %v766 = vpack.c.b16 %v702, %v698
        %v767 = vpack.c.b16 %v703, %v699
        %v768 = vpack.c.b16 %v708, %v704
        %v769 = vpack.c.b16 %v709, %v705
        %v770 = vpack.c.b16 %v710, %v706
        %v771 = vpack.c.b16 %v711, %v707
        %v772 = vpack.c.b16 %v716, %v712
        %v773 = vpack.c.b16 %v717, %v713
        %v774 = vpack.c.b16 %v718, %v714
        %v775 = vpack.c.b16 %v719, %v715
        %v776 = vpack.c.b16 %v724, %v720
        %v777 = vpack.c.b16 %v725, %v721
        %v778 = vpack.c.b16 %v726, %v722
        %v779 = vpack.c.b16 %v727, %v723
        %v780 = vpack.c.b16 %v732, %v728
        %v781 = vpack.c.b16 %v733, %v729
        %v782 = vpack.c.b16 %v734, %v730
        %v783 = vpack.c.b16 %v735, %v731
        %v784 = vpack.c.b16 %v740, %v736
        %v785 = vpack.c.b16 %v741, %v737
        %v786 = vpack.c.b16 %v742, %v738
        %v787 = vpack.c.b16 %v743, %v739
        %v788 = vpack.c.b16 %v748, %v744
        %v789 = vpack.c.b16 %v749, %v745
        %v790 = vpack.c.b16 %v750, %v746
        %v791 = vpack.c.b16 %v751, %v747
        %v792 = vpack.c.b16 %v756, %v752
        %v793 = vpack.c.b16 %v757, %v753
        %v794 = vpack.c.b16 %v758, %v754
        %v795 = vpack.c.b16 %v759, %v755
        %832 = vmatprep.subr.bf16.mxu0 %v761
        %833 = vmatpush1.bf16.msra.mxu0 %v760
        %834 = vmatprep.subr.bf16.mxu0 %v765
        %835 = vmatpush1.bf16.msra.mxu0 %v764
        %836 = vmatprep.subr.bf16.mxu0 %v769
        %837 = vmatpush1.bf16.msra.mxu0 %v768
        %838 = vmatprep.subr.bf16.mxu0 %v773
        %839 = vmatpush1.bf16.msra.mxu0 %v772
        %840 = vmatprep.subr.bf16.mxu0 %v777
        %841 = vmatpush1.bf16.msra.mxu0 %v776
        %842 = vmatprep.subr.bf16.mxu0 %v781
        %843 = vmatpush1.bf16.msra.mxu0 %v780
        %844 = vmatprep.subr.bf16.mxu0 %v785
        %845 = vmatpush1.bf16.msra.mxu0 %v784
        %846 = vmatprep.subr.bf16.mxu0 %v789
        %847 = vmatpush1.bf16.msra.mxu0 %v788
        %848 = vmatprep.subr.bf16.mxu0 %v793
        %849 = vmatpush1.bf16.msra.mxu0 %v792
        %850 = vmatprep.subr.bf16.mxu0 0
        %851 = vmatpush1.bf16.msra.mxu0 0
        %852 = vmatprep.subr.bf16.mxu0 0
        %853 = vmatpush1.bf16.msra.mxu0 0
        %854 = vmatprep.subr.bf16.mxu0 0
        %855 = vmatpush1.bf16.msra.mxu0 0
        %856 = vmatprep.subr.bf16.mxu0 0
        %857 = vmatpush1.bf16.msra.mxu0 0
        %858 = vmatprep.subr.bf16.mxu0 0
        %859 = vmatpush1.bf16.msra.mxu0 0
        %860 = vmatprep.subr.bf16.mxu0 0
        %861 = vmatpush1.bf16.msra.mxu0 0
        %862 = vmatprep.subr.bf16.mxu0 0
        %863 = vmatpush1.bf16.msra.mxu0 0
        %864 = vmatprep.mubr.bf16.mxu0 %v568
        %865 = vmatmul.mubr.bf16.gmra.mrb[0].mxu0 %v311
        %v866 = vpop.f32.mrb[0].mxu0
        %v867 = vadd.f32 %v605, %v866
        %v868 = vpop.f32.mrb[0].mxu0
        %v869 = vadd.f32 %v607, %v868
        %v870 = vpop.f32.mrb[0].mxu0
        %v871 = vpop.f32.mrb[0].mxu0
        %872 = vdwg.mxu0
        %873 = vmatprep.subr.bf16.mxu0 %v763
        %874 = vmatpush1.bf16.msra.mxu0 %v762
        %875 = vmatprep.subr.bf16.mxu0 %v767
        %876 = vmatpush1.bf16.msra.mxu0 %v766
        %877 = vmatprep.subr.bf16.mxu0 %v771
        %878 = vmatpush1.bf16.msra.mxu0 %v770
        %879 = vmatprep.subr.bf16.mxu0 %v775
        %880 = vmatpush1.bf16.msra.mxu0 %v774
        %881 = vmatprep.subr.bf16.mxu0 %v779
        %882 = vmatpush1.bf16.msra.mxu0 %v778
        %883 = vmatprep.subr.bf16.mxu0 %v783
        %884 = vmatpush1.bf16.msra.mxu0 %v782
        %885 = vmatprep.subr.bf16.mxu0 %v787
        %886 = vmatpush1.bf16.msra.mxu0 %v786
        %887 = vmatprep.subr.bf16.mxu0 %v791
        %888 = vmatpush1.bf16.msra.mxu0 %v790
        %889 = vmatprep.subr.bf16.mxu0 %v795
        %890 = vmatpush1.bf16.msra.mxu0 %v794
        %891 = vmatprep.subr.bf16.mxu0 0
        %892 = vmatpush1.bf16.msra.mxu0 0
        %893 = vmatprep.subr.bf16.mxu0 0
        %894 = vmatpush1.bf16.msra.mxu0 0
        %895 = vmatprep.subr.bf16.mxu0 0
        %896 = vmatpush1.bf16.msra.mxu0 0
        %897 = vmatprep.subr.bf16.mxu0 0
        %898 = vmatpush1.bf16.msra.mxu0 0
        %899 = vmatprep.subr.bf16.mxu0 0
        %900 = vmatpush1.bf16.msra.mxu0 0
        %901 = vmatprep.subr.bf16.mxu0 0
        %902 = vmatpush1.bf16.msra.mxu0 0
        %903 = vmatprep.subr.bf16.mxu0 0
        %904 = vmatpush1.bf16.msra.mxu0 0
        %905 = vmatprep.mubr.bf16.mxu0 %v568
        %906 = vmatmul.mubr.bf16.gmra.mrb[0].mxu0 %v311
        %v907 = vpop.f32.mrb[0].mxu0
        %v908 = vadd.f32 %v646, %v907
        %v909 = vpop.f32.mrb[0].mxu0
        %v910 = vadd.f32 %v648, %v909
        %v911 = vpop.f32.mrb[0].mxu0
        %v912 = vpop.f32.mrb[0].mxu0
        %913 = vdwg.mxu0
        %s914 = scalar_lea.vmem [#allocation5], 576
        %v915 = vld [vmem:[%s914] sm:$0xff]
        %v916 = vld [vmem:[%s914 + $0x8] sm:$0xff]
        %v917 = vld [vmem:[%s914 + $0x10] sm:$0xff]
        %v918 = vld [vmem:[%s914 + $0x18] sm:$0xff]
        %v919 = vld [vmem:[%s914 + $0x20] sm:$0xff]
        %v920 = vld [vmem:[%s914 + $0x28] sm:$0xff]
        %v921 = vld [vmem:[%s914 + $0x30] sm:$0xff]
        %v922 = vld [vmem:[%s914 + $0x38] sm:$0xff]
        %v923 = vld [vmem:[%s914 + $0x40] sm:$0xff]
        %v924 = vld [vmem:[%s914 + $0x48] sm:$0xff]
        %v925 = vld [vmem:[%s914 + $0x50] sm:$0xff]
        %v926 = vld [vmem:[%s914 + $0x58] sm:$0xff]
        %v927 = vld [vmem:[%s914 + $0x60] sm:$0xff]
        %v928 = vld [vmem:[%s914 + $0x68] sm:$0xff]
        %v929 = vld [vmem:[%s914 + $0x70] sm:$0xff]
        %v930 = vld [vmem:[%s914 + $0x78] sm:$0xff]
        %v931 = vld [vmem:[%s914 + $0x80] sm:$0xff]
        %v932 = vld [vmem:[%s914 + $0x88] sm:$0xff]
        %v933 = vld [vmem:[%s914 + $0x90] sm:$0xff]
        %v934 = vld [vmem:[%s914 + $0x98] sm:$0xff]
        %v935 = vld [vmem:[%s914 + $0xa0] sm:$0xff]
        %v936 = vld [vmem:[%s914 + $0xa8] sm:$0xff]
        %v937 = vld [vmem:[%s914 + $0xb0] sm:$0xff]
        %v938 = vld [vmem:[%s914 + $0xb8] sm:$0xff]
        %v939 = vld [vmem:[%s914 + $0xc0] sm:$0xff]
        %v940 = vld [vmem:[%s914 + $0xc8] sm:$0xff]
        %v941 = vld [vmem:[%s914 + $0xd0] sm:$0xff]
        %v942 = vld [vmem:[%s914 + $0xd8] sm:$0xff]
        %v943 = vld [vmem:[%s914 + $0xe0] sm:$0xff]
        %v944 = vld [vmem:[%s914 + $0xe8] sm:$0xff]
        %v945 = vld [vmem:[%s914 + $0xf0] sm:$0xff]
        %v946 = vld [vmem:[%s914 + $0xf8] sm:$0xff]
        %v947 = vld [vmem:[%s914 + $0x100] sm:$0xff]
        %v948 = vld [vmem:[%s914 + $0x108] sm:$0xff]
        %v949 = vld [vmem:[%s914 + $0x110] sm:$0xff]
        %v950 = vld [vmem:[%s914 + $0x118] sm:$0xff]
        %v987 = vunpack.c.l.b16 %v915
        %v988 = vunpack.c.h.b16 %v915
        %v989 = vunpack.c.l.b16 %v916
        %v990 = vunpack.c.h.b16 %v916
        %v991 = vunpack.c.l.b16 %v917
        %v992 = vunpack.c.h.b16 %v917
        %v993 = vunpack.c.l.b16 %v918
        %v994 = vunpack.c.h.b16 %v918
        %v995 = vunpack.c.l.b16 %v919
        %v996 = vunpack.c.h.b16 %v919
        %v997 = vunpack.c.l.b16 %v920
        %v998 = vunpack.c.h.b16 %v920
        %v999 = vunpack.c.l.b16 %v921
        %v1000 = vunpack.c.h.b16 %v921
        %v1001 = vunpack.c.l.b16 %v922
        %v1002 = vunpack.c.h.b16 %v922
        %v1003 = vunpack.c.l.b16 %v923
        %v1004 = vunpack.c.h.b16 %v923
        %v1005 = vunpack.c.l.b16 %v924
        %v1006 = vunpack.c.h.b16 %v924
        %v1007 = vunpack.c.l.b16 %v925
        %v1008 = vunpack.c.h.b16 %v925
        %v1009 = vunpack.c.l.b16 %v926
        %v1010 = vunpack.c.h.b16 %v926
        %v1011 = vunpack.c.l.b16 %v927
        %v1012 = vunpack.c.h.b16 %v927
        %v1013 = vunpack.c.l.b16 %v928
        %v1014 = vunpack.c.h.b16 %v928
        %v1015 = vunpack.c.l.b16 %v929
        %v1016 = vunpack.c.h.b16 %v929
        %v1017 = vunpack.c.l.b16 %v930
        %v1018 = vunpack.c.h.b16 %v930
        %v1019 = vunpack.c.l.b16 %v931
        %v1020 = vunpack.c.h.b16 %v931
        %v1021 = vunpack.c.l.b16 %v932
        %v1022 = vunpack.c.h.b16 %v932
        %v1023 = vunpack.c.l.b16 %v933
        %v1024 = vunpack.c.h.b16 %v933
        %v1025 = vunpack.c.l.b16 %v934
        %v1026 = vunpack.c.h.b16 %v934
        %v1027 = vunpack.c.l.b16 %v935
        %v1028 = vunpack.c.h.b16 %v935
        %v1029 = vunpack.c.l.b16 %v936
        %v1030 = vunpack.c.h.b16 %v936
        %v1031 = vunpack.c.l.b16 %v937
        %v1032 = vunpack.c.h.b16 %v937
        %v1033 = vunpack.c.l.b16 %v938
        %v1034 = vunpack.c.h.b16 %v938
        %v1035 = vunpack.c.l.b16 %v939
        %v1036 = vunpack.c.h.b16 %v939
        %v1037 = vunpack.c.l.b16 %v940
        %v1038 = vunpack.c.h.b16 %v940
        %v1039 = vunpack.c.l.b16 %v941
        %v1040 = vunpack.c.h.b16 %v941
        %v1041 = vunpack.c.l.b16 %v942
        %v1042 = vunpack.c.h.b16 %v942
        %v1043 = vunpack.c.l.b16 %v943
        %v1044 = vunpack.c.h.b16 %v943
        %v1045 = vunpack.c.l.b16 %v944
        %v1046 = vunpack.c.h.b16 %v944
        %v1047 = vunpack.c.l.b16 %v945
        %v1048 = vunpack.c.h.b16 %v945
        %v1049 = vunpack.c.l.b16 %v946
        %v1050 = vunpack.c.h.b16 %v946
        %v1051 = vunpack.c.l.b16 %v947
        %v1052 = vunpack.c.h.b16 %v947
        %v1053 = vunpack.c.l.b16 %v948
        %v1054 = vunpack.c.h.b16 %v948
        %v1055 = vunpack.c.l.b16 %v949
        %v1056 = vunpack.c.h.b16 %v949
        %v1057 = vunpack.c.l.b16 %v950
        %v1058 = vunpack.c.h.b16 %v950
        %v1059 = vpack.c.b16 %v991, %v987
        %v1060 = vpack.c.b16 %v992, %v988
        %v1061 = vpack.c.b16 %v993, %v989
        %v1062 = vpack.c.b16 %v994, %v990
        %v1063 = vpack.c.b16 %v999, %v995
        %v1064 = vpack.c.b16 %v1000, %v996
        %v1065 = vpack.c.b16 %v1001, %v997
        %v1066 = vpack.c.b16 %v1002, %v998
        %v1067 = vpack.c.b16 %v1007, %v1003
        %v1068 = vpack.c.b16 %v1008, %v1004
        %v1069 = vpack.c.b16 %v1009, %v1005
        %v1070 = vpack.c.b16 %v1010, %v1006
        %v1071 = vpack.c.b16 %v1015, %v1011
        %v1072 = vpack.c.b16 %v1016, %v1012
        %v1073 = vpack.c.b16 %v1017, %v1013
        %v1074 = vpack.c.b16 %v1018, %v1014
        %v1075 = vpack.c.b16 %v1023, %v1019
        %v1076 = vpack.c.b16 %v1024, %v1020
        %v1077 = vpack.c.b16 %v1025, %v1021
        %v1078 = vpack.c.b16 %v1026, %v1022
        %v1079 = vpack.c.b16 %v1031, %v1027
        %v1080 = vpack.c.b16 %v1032, %v1028
        %v1081 = vpack.c.b16 %v1033, %v1029
        %v1082 = vpack.c.b16 %v1034, %v1030
        %v1083 = vpack.c.b16 %v1039, %v1035
        %v1084 = vpack.c.b16 %v1040, %v1036
        %v1085 = vpack.c.b16 %v1041, %v1037
        %v1086 = vpack.c.b16 %v1042, %v1038
        %v1087 = vpack.c.b16 %v1047, %v1043
        %v1088 = vpack.c.b16 %v1048, %v1044
        %v1089 = vpack.c.b16 %v1049, %v1045
        %v1090 = vpack.c.b16 %v1050, %v1046
        %v1091 = vpack.c.b16 %v1055, %v1051
        %v1092 = vpack.c.b16 %v1056, %v1052
        %v1093 = vpack.c.b16 %v1057, %v1053
        %v1094 = vpack.c.b16 %v1058, %v1054
        %1131 = vmatprep.subr.bf16.mxu0 %v1060
        %1132 = vmatpush1.bf16.msra.mxu0 %v1059
        %1133 = vmatprep.subr.bf16.mxu0 %v1064
        %1134 = vmatpush1.bf16.msra.mxu0 %v1063
        %1135 = vmatprep.subr.bf16.mxu0 %v1068
        %1136 = vmatpush1.bf16.msra.mxu0 %v1067
        %1137 = vmatprep.subr.bf16.mxu0 %v1072
        %1138 = vmatpush1.bf16.msra.mxu0 %v1071
        %1139 = vmatprep.subr.bf16.mxu0 %v1076
        %1140 = vmatpush1.bf16.msra.mxu0 %v1075
        %1141 = vmatprep.subr.bf16.mxu0 %v1080
        %1142 = vmatpush1.bf16.msra.mxu0 %v1079
        %1143 = vmatprep.subr.bf16.mxu0 %v1084
        %1144 = vmatpush1.bf16.msra.mxu0 %v1083
        %1145 = vmatprep.subr.bf16.mxu0 %v1088
        %1146 = vmatpush1.bf16.msra.mxu0 %v1087
        %1147 = vmatprep.subr.bf16.mxu0 %v1092
        %1148 = vmatpush1.bf16.msra.mxu0 %v1091
        %1149 = vmatprep.subr.bf16.mxu0 0
        %1150 = vmatpush1.bf16.msra.mxu0 0
        %1151 = vmatprep.subr.bf16.mxu0 0
        %1152 = vmatpush1.bf16.msra.mxu0 0
        %1153 = vmatprep.subr.bf16.mxu0 0
        %1154 = vmatpush1.bf16.msra.mxu0 0
        %1155 = vmatprep.subr.bf16.mxu0 0
        %1156 = vmatpush1.bf16.msra.mxu0 0
        %1157 = vmatprep.subr.bf16.mxu0 0
        %1158 = vmatpush1.bf16.msra.mxu0 0
        %1159 = vmatprep.subr.bf16.mxu0 0
        %1160 = vmatpush1.bf16.msra.mxu0 0
        %1161 = vmatprep.subr.bf16.mxu0 0
        %1162 = vmatpush1.bf16.msra.mxu0 0
        %1163 = vmatprep.mubr.bf16.mxu0 %v568
        %1164 = vmatmul.mubr.bf16.gmra.mrb[0].mxu0 %v311
        %v1165 = vpop.f32.mrb[0].mxu0
        %v1166 = vadd.f32 0.0, %v1165
        %v1167 = vpop.f32.mrb[0].mxu0
        %v1168 = vadd.f32 0.0, %v1167
        %v1169 = vpop.f32.mrb[0].mxu0
        %v1170 = vpop.f32.mrb[0].mxu0
        %1171 = vdwg.mxu0
        %1172 = vmatprep.subr.bf16.mxu0 %v1062
        %1173 = vmatpush1.bf16.msra.mxu0 %v1061
        %1174 = vmatprep.subr.bf16.mxu0 %v1066
        %1175 = vmatpush1.bf16.msra.mxu0 %v1065
        %1176 = vmatprep.subr.bf16.mxu0 %v1070
        %1177 = vmatpush1.bf16.msra.mxu0 %v1069
        %1178 = vmatprep.subr.bf16.mxu0 %v1074
        %1179 = vmatpush1.bf16.msra.mxu0 %v1073
        %1180 = vmatprep.subr.bf16.mxu0 %v1078
        %1181 = vmatpush1.bf16.msra.mxu0 %v1077
        %1182 = vmatprep.subr.bf16.mxu0 %v1082
        %1183 = vmatpush1.bf16.msra.mxu0 %v1081
        %1184 = vmatprep.subr.bf16.mxu0 %v1086
        %1185 = vmatpush1.bf16.msra.mxu0 %v1085
        %1186 = vmatprep.subr.bf16.mxu0 %v1090
        %1187 = vmatpush1.bf16.msra.mxu0 %v1089
        %1188 = vmatprep.subr.bf16.mxu0 %v1094
        %1189 = vmatpush1.bf16.msra.mxu0 %v1093
        %1190 = vmatprep.subr.bf16.mxu0 0
        %1191 = vmatpush1.bf16.msra.mxu0 0
        %1192 = vmatprep.subr.bf16.mxu0 0
        %1193 = vmatpush1.bf16.msra.mxu0 0
        %1194 = vmatprep.subr.bf16.mxu0 0
        %1195 = vmatpush1.bf16.msra.mxu0 0
        %1196 = vmatprep.subr.bf16.mxu0 0
        %1197 = vmatpush1.bf16.msra.mxu0 0
        %1198 = vmatprep.subr.bf16.mxu0 0
        %1199 = vmatpush1.bf16.msra.mxu0 0
        %1200 = vmatprep.subr.bf16.mxu0 0
        %1201 = vmatpush1.bf16.msra.mxu0 0
        %1202 = vmatprep.subr.bf16.mxu0 0
        %1203 = vmatpush1.bf16.msra.mxu0 0
        %1204 = vmatprep.mubr.bf16.mxu0 %v568
        %1205 = vmatmul.mubr.bf16.gmra.mrb[0].mxu0 %v311
        %v1206 = vpop.f32.mrb[0].mxu0
        %v1207 = vadd.f32 0.0, %v1206
        %v1208 = vpop.f32.mrb[0].mxu0
        %v1209 = vadd.f32 0.0, %v1208
        %v1210 = vpop.f32.mrb[0].mxu0
        %v1211 = vpop.f32.mrb[0].mxu0
        %1212 = vdwg.mxu0
        %v1213 = vadd.f32 %v867, %v1166
        %v1214 = vadd.f32 %v869, %v1168
        %v1215 = vadd.f32 %v908, %v1207
        %v1216 = vadd.f32 %v910, %v1209
        %1217 = vst [vmem:[%s173] sm:$0xff] %v1213
        %1218 = vst [vmem:[%s173 + $0x8] sm:$0xff] %v1214
        %1219 = vst [vmem:[%s173 + $0x10] sm:$0xff] %v1215
        %1220 = vst [vmem:[%s173 + $0x18] sm:$0xff] %v1216
        %s1221 = sand.u32 %s75, 1
        %s1222 = scalar_lea.sflag [#allocation4], %s1221
        %s1223 = sand.u32 %s75, 1
        %s1224 = smul.addr %s1223, 32
        %s1225 = scalar_lea.vmem [#allocation7], %s1224
        // Predicated region
        $region37: #{tpu_custom_call.1} parent=27 // pred_check
          %p1226 = pneg %p85
        $region38: #{tpu_custom_call.1} parent=27 // pred_check_branch
          %1228 = sbr.rel (%p1226) target = $region40
        $region39: #{tpu_custom_call.1} parent=27 // pred_region
          %s1230 = ssub.s32 512, 512
          %1231 = vsyncadd %s1222, %s1230
          %s1232 = smul.addr %s20, 4
          %s1233 = smul.addr %s1232, 128
          %s1234 = scalar_lea.hbm %s2, %s1233
          %s1236 = sshll.u32 %s1225, 4
          %s1237 = int_to_ptr.vmem [resolvable:$true] %s1236
          %1239 = dma.vmem_to_hbm [thread:$0]  %s1237, 512, %s1234, %s1222
        $region40: #{tpu_custom_call.1} parent=27 // pred_fallthru
          _
      $region28: #{tpu_custom_call.1} parent=5 // pred_fallthru
        _
      %p1240 = scmp.le.s32.totalorder 2, %s15
      // Predicated region
      $region41: #{tpu_custom_call.1} parent=5 // pred_check
        %p1241 = pneg %p1240
      $region42: #{tpu_custom_call.1} parent=5 // pred_check_branch
        %1243 = sbr.rel (%p1241) target = $region44
      $region43: #{tpu_custom_call.1} parent=5 // pred_region
        %s1244 = ssub.s32 %s15, 2
        // Predicated region
        $region45: #{tpu_custom_call.1} parent=43 // pred_check
          %p1245 = pneg %p91
        $region46: #{tpu_custom_call.1} parent=43 // pred_check_branch
          %1247 = sbr.rel (%p1245) target = $region48
        $region47: #{tpu_custom_call.1} parent=43 // pred_region
          %s1248 = sand.u32 %s76, 1
          %s1249 = scalar_lea.sflag [#allocation4], %s1248
          %s1250 = sand.u32 %s76, 1
          %s1251 = smul.addr %s1250, 32
          %s1252 = scalar_lea.vmem [#allocation7], %s1251
          %1253 = dma.done %s1249, 512
        $region48: #{tpu_custom_call.1} parent=43 // pred_fallthru
          _
      $region44: #{tpu_custom_call.1} parent=5 // pred_fallthru
        _
    $region6: #{tpu_custom_call.1} parent=1 // loop_footer
      %s19 = sadd.s32 1, %s15
    $region7: #{tpu_custom_call.1} parent=1 // loop_footer_branch
      %14 = sbr.rel target = $region3
    $region8: #{tpu_custom_call.1} parent=1 // loop_exit
      _
    %1254 = vsyncpa [#allocation3], 1
    %s1255 = scalar_lea.sflag [#allocation3], 1
    %1256 = vsyncpa %s1255, 1
    %1257 = vsyncpa [#allocation6], 1
    %1258 = vsyncpa [#allocation4], 1
    %s1259 = scalar_lea.sflag [#allocation4], 1
    %1260 = vsyncpa %s1259, 1

</llo_original>
